<compile_context>
chip_gen: v7x
topology: tpu7x:2x2x1
jax: 0.10.0
libtpu: 0.0.40
codegen_flags: <defaults>
</compile_context>

<pallas_src>
import functools

import numpy as np
import jax
import jax.numpy as jnp
from jax.experimental import pallas as pl
from jax.experimental.pallas import tpu as pltpu


def _bilinear_weight_matrix(in_size: int, out_size: int) -> np.ndarray:
    """Row-stochastic (out_size, in_size) matrix reproducing PyTorch's
    upsample_bilinear2d with align_corners=False along one axis."""
    scale = in_size / out_size
    o = np.arange(out_size, dtype=np.float64)
    src = np.maximum((o + 0.5) * scale - 0.5, 0.0)   # clamp negatives (PyTorch)
    x0 = np.minimum(np.floor(src).astype(np.int64), in_size - 1)
    lam = src - x0                                    # weight of the upper neighbor
    x1 = np.minimum(x0 + 1, in_size - 1)
    w = np.zeros((out_size, in_size), dtype=np.float32)
    rows = np.arange(out_size)
    np.add.at(w, (rows, x0), (1.0 - lam).astype(np.float32))
    np.add.at(w, (rows, x1), lam.astype(np.float32))  # x0 == x1 at border -> sums to 1
    return w


def _resize_kernel(wht_ref, ww_ref, x_ref, o_ref):
    # wht_ref: (H, out_h)   ww_ref: (W, out_w)   -- compute dtype (f32 or bf16)
    # x_ref  : (TB, H, W)   o_ref : (TB, out_h, out_w)
    tb, h, w = x_ref.shape
    out_h = wht_ref.shape[1]
    out_w = ww_ref.shape[1]
    cdt = ww_ref.dtype

    x = x_ref[...]
    if x.dtype != cdt:
        # Only taken for dtypes without a native MXU path (e.g. f16/int inputs).
        x = x.astype(cdt)

    # ---- Step 1: contract W with ONE big MXU matmul across the whole block.
    # (leading/sublane-dim collapse, lane dim unchanged)
    t = jnp.dot(x.reshape(tb * h, w), ww_ref[...],
                preferred_element_type=jnp.float32)            # (TB*H, out_w) f32
    t = t.reshape(tb, h, out_w)                                 # (TB, H, out_w)
    if cdt != jnp.float32:
        t = t.astype(cdt)   # keep step 2 on the native-rate MXU path as well

    # ---- Step 2: contract H with ONE big MXU matmul across the whole block.
    # Trailing-2D transposes ride the XLU slot (not saturated here); the
    # reshapes only touch leading/sublane dims.  This replaces TB tiny
    # (out_h,H)x(H,out_w) matmuls and the materialized Wh broadcast.
    tt = jnp.transpose(t, (0, 2, 1)).reshape(tb * out_w, h)     # (TB*out_w, H)
    y = jnp.dot(tt, wht_ref[...],
                preferred_element_type=jnp.float32)             # (TB*out_w, out_h) f32
    y = y.reshape(tb, out_w, out_h).astype(o_ref.dtype)         # single final cast
    o_ref[...] = jnp.transpose(y, (0, 2, 1))                    # (TB, out_h, out_w)


def _device_kind() -> str:
    try:
        return jax.devices()[0].device_kind.lower()
    except Exception:
        return ""


def _num_tensorcores() -> int:
    """TensorCores per chip/device: 2 on v7x (and v4/v5p megacore), else 1."""
    kind = _device_kind()
    return 2 if ("7" in kind or "v4" in kind or "v5p" in kind) else 1


def _vmem_limit_bytes() -> int:
    """Scoped-VMEM limit: ~0.85 of the generation's physical VMEM."""
    cap = None
    try:
        cap = int(pltpu.get_tpu_info().vmem_capacity_bytes)
    except Exception:
        cap = None
    if not cap:
        # Device-kind fallback: 64 MiB on v7x, 128 MiB on v5e/v6e.
        cap = (64 if "7" in _device_kind() else 128) * 1024 * 1024
    return int(cap * 0.85)


def _pick_block_batch(b, h, w, out_h, out_w, x_isz, c_isz, budget_bytes, n_cores):
    """Largest batch-of-slices block that fits the VMEM budget, clamped so the
    grid keeps enough steps for DMA/compute overlap (per-core on v7x)."""
    per_slice = (
        2 * h * w * x_isz               # double-buffered input block
        + 2 * out_h * out_w * x_isz     # double-buffered output block
        + h * w * c_isz                 # compute-dtype view of the input block
        + 4 * h * out_w                 # f32 step-1 accumulator
        + 2 * c_isz * h * out_w         # step-1 result in compute dtype + transpose
        + 4 * out_w * out_h             # f32 step-2 result
        + (4 + x_isz) * out_h * out_w   # reshaped/cast copy + final transpose
    )
    fixed = 2 * c_isz * (h * out_h + w * out_w)   # (double-buffered) weight matrices
    tb = max(1, (budget_bytes - fixed) // per_slice)
    tb = int(min(tb, 512, b))

    # >= 2 grid steps per TensorCore on dual-core parts (both cores busy AND
    # double-buffer overlap); ~3 steps on single-core parts for pipelining.
    # Only force extra steps when there is enough data for pipelining to matter
    # (don't pay ~0.35 us/step overhead on tiny problems).
    min_steps = 2 * n_cores if n_cores > 1 else 3
    total_io = b * (h * w + out_h * out_w) * x_isz
    if b >= min_steps and total_io > (4 << 20):
        tb = min(tb, -(-b // min_steps))
    return max(1, int(tb))


@functools.partial(jax.jit, static_argnums=1)
def resize_bilinear(x: jnp.ndarray, size: int) -> jnp.ndarray:
    """Pallas equivalent of F.interpolate(x, (size, size), mode='bilinear')."""
    n, c, h, w = x.shape
    out_h = out_w = int(size)

    # bf16 inputs keep a native-rate MXU path (no f32 upcast of the block);
    # everything else computes in f32 on-chip (f32 accumulation in all cases).
    compute_dtype = jnp.bfloat16 if x.dtype == jnp.bfloat16 else jnp.float32
    c_isz = np.dtype(compute_dtype).itemsize
    wht = jnp.asarray(_bilinear_weight_matrix(h, out_h).T, dtype=compute_dtype)  # (H, out_h)
    ww = jnp.asarray(_bilinear_weight_matrix(w, out_w).T, dtype=compute_dtype)   # (W, out_w)

    b = n * c
    x_flat = x.reshape(b, h, w)                                # free reshape, no upcast

    vmem_limit = _vmem_limit_bytes()
    n_cores = _num_tensorcores()
    tb = _pick_block_batch(b, h, w, out_h, out_w, x.dtype.itemsize, c_isz,
                           int(vmem_limit * 0.9), n_cores)
    grid = (pl.cdiv(b, tb),)

    cost = pl.CostEstimate(
        flops=int(2 * b * h * out_w * (w + out_h)),
        transcendentals=0,
        bytes_accessed=int(b * (h * w + out_h * out_w) * x.dtype.itemsize
                           + (h * out_h + w * out_w) * c_isz),
    )

    out_flat = pl.pallas_call(
        _resize_kernel,
        out_shape=jax.ShapeDtypeStruct((b, out_h, out_w), x.dtype),
        grid_spec=pltpu.PrefetchScalarGridSpec(
            num_scalar_prefetch=0,
            grid=grid,
            in_specs=[
                pl.BlockSpec((h, out_h), lambda i: (0, 0)),     # Wh^T (fetched once)
                pl.BlockSpec((w, out_w), lambda i: (0, 0)),     # Ww   (fetched once)
                pl.BlockSpec((tb, h, w), lambda i: (i, 0, 0)),  # TB image slices
            ],
            out_specs=pl.BlockSpec((tb, out_h, out_w), lambda i: (i, 0, 0)),
        ),
        compiler_params=pltpu.CompilerParams(
            dimension_semantics=("parallel",),
            vmem_limit_bytes=vmem_limit,
        ),
        cost_estimate=cost,
    )(wht, ww, x_flat)

    return out_flat.reshape(n, c, out_h, out_w)


if __name__ == "__main__":
    key = jax.random.PRNGKey(0)
    # NCHW input, small shapes: batch=2, channels=4, spatial=16x16, resize to 8x8
    x = jax.random.normal(key, (2, 4, 16, 16), dtype=jnp.float32)
    size = 8

    y = resize_bilinear(x, size)
    jax.block_until_ready(y)

    assert y.shape == (2, 4, size, size)
    assert y.dtype == x.dtype

    # Sanity check against a pure-JAX separable reference using the same weights.
    wh_ref = jnp.asarray(_bilinear_weight_matrix(16, size))
    ww_ref = jnp.asarray(_bilinear_weight_matrix(16, size).T)
    y_ref = jnp.einsum("oh,bhw,wv->bov", wh_ref,
                       x.reshape(-1, 16, 16).astype(jnp.float32),
                       ww_ref).reshape(2, 4, size, size).astype(x.dtype)
    assert jnp.allclose(y, y_ref, rtol=1e-4, atol=1e-4)

    print("KERNEL_OK")
</pallas_src>

<mosaic_0001>
module attributes {stable_mosaic.version = 11 : i64} {
  func.func @_resize_kernel(%arg0: i32, %arg1: memref<16x8xf32, #tpu.memory_space<vmem>>, %arg2: memref<16x8xf32, #tpu.memory_space<vmem>>, %arg3: memref<8x16x16xf32, #tpu.memory_space<vmem>>, %arg4: memref<8x8x8xf32, #tpu.memory_space<vmem>>) attributes {dimension_semantics = [#tpu.dimension_semantics<parallel>], iteration_bounds = array<i64: 1>, scalar_prefetch = 0 : i64, scratch_operands = 0 : i64, tpu.core_type = #tpu.core_type<tc>, window_params = [{pipeline_mode = #tpu.pipeline_mode<synchronous>, transform_indices = @transform_0, window_bounds = array<i64: 16, 8>}, {pipeline_mode = #tpu.pipeline_mode<synchronous>, transform_indices = @transform_1, window_bounds = array<i64: 16, 8>}, {transform_indices = @transform_2, window_bounds = array<i64: 8, 16, 16>}, {transform_indices = @transform_3, window_bounds = array<i64: 8, 8, 8>}]} {
    %c0 = arith.constant 0 : index
    %c0_0 = arith.constant 0 : index
    %c0_1 = arith.constant 0 : index
    %0 = vector.load %arg3[%c0, %c0_0, %c0_1] : memref<8x16x16xf32, #tpu.memory_space<vmem>>, vector<8x16x16xf32>
    %1 = vector.shape_cast %0 : vector<8x16x16xf32> to vector<128x16xf32>
    %c0_2 = arith.constant 0 : index
    %c0_3 = arith.constant 0 : index
    %2 = vector.load %arg2[%c0_2, %c0_3] : memref<16x8xf32, #tpu.memory_space<vmem>>, vector<16x8xf32>
    %cst = arith.constant dense<0.000000e+00> : vector<128x8xf32>
    %3 = tpu.matmul %1, %2, %cst {dimension_numbers = #tpu.dot_dimension_numbers<[1], [0], [0], [1], [0, 0, 1, 1], [], []>} : vector<128x16xf32>, vector<16x8xf32>, vector<128x8xf32> -> vector<128x8xf32>
    %4 = vector.shape_cast %3 : vector<128x8xf32> to vector<8x16x8xf32>
    %5 = tpu.transpose %4, [0, 2, 1] : vector<8x16x8xf32> -> vector<8x8x16xf32>
    %6 = vector.shape_cast %5 : vector<8x8x16xf32> to vector<64x16xf32>
    %c0_4 = arith.constant 0 : index
    %c0_5 = arith.constant 0 : index
    %7 = vector.load %arg1[%c0_4, %c0_5] : memref<16x8xf32, #tpu.memory_space<vmem>>, vector<16x8xf32>
    %cst_6 = arith.constant dense<0.000000e+00> : vector<64x8xf32>
    %8 = tpu.matmul %6, %7, %cst_6 {dimension_numbers = #tpu.dot_dimension_numbers<[1], [0], [0], [1], [0, 0, 1, 1], [], []>} : vector<64x16xf32>, vector<16x8xf32>, vector<64x8xf32> -> vector<64x8xf32>
    %9 = vector.shape_cast %8 : vector<64x8xf32> to vector<8x8x8xf32>
    %10 = tpu.transpose %9, [0, 2, 1] : vector<8x8x8xf32> -> vector<8x8x8xf32>
    %c0_7 = arith.constant 0 : index
    %c0_8 = arith.constant 0 : index
    %c0_9 = arith.constant 0 : index
    %11 = vector.load %arg4[%c0_7, %c0_8, %c0_9] : memref<8x8x8xf32, #tpu.memory_space<vmem>>, vector<8x8x8xf32>
    tpu.vector_store %arg4[%c0_7, %c0_8, %c0_9], %10 {strides = array<i32>} : memref<8x8x8xf32, #tpu.memory_space<vmem>>, vector<8x8x8xf32>,
    return
  }
  func.func @transform_0(%arg0: i32) -> (i32, i32) {
    %c0_i32 = arith.constant 0 : i32
    %c0_i32_0 = arith.constant 0 : i32
    %c0_i32_1 = arith.constant 0 : i32
    return %c0_i32, %c0_i32_0 : i32, i32
  }
  func.func @transform_1(%arg0: i32) -> (i32, i32) {
    %c0_i32 = arith.constant 0 : i32
    %c0_i32_0 = arith.constant 0 : i32
    %c0_i32_1 = arith.constant 0 : i32
    return %c0_i32, %c0_i32_0 : i32, i32
  }
  func.func @transform_2(%arg0: i32) -> (i32, i32, i32) {
    %c0_i32 = arith.constant 0 : i32
    %c0_i32_0 = arith.constant 0 : i32
    %c0_i32_1 = arith.constant 0 : i32
    return %arg0, %c0_i32, %c0_i32_0 : i32, i32, i32
  }
  func.func @transform_3(%arg0: i32) -> (i32, i32, i32) {
    %c0_i32 = arith.constant 0 : i32
    %c0_i32_0 = arith.constant 0 : i32
    %c0_i32_1 = arith.constant 0 : i32
    return %arg0, %c0_i32, %c0_i32_0 : i32, i32, i32
  }
}

</mosaic_0001>

<llo_original>
// kernel: resize_bilinear.1
$region0: #{resize_bilinear.1}
  #allocation0 [shape = 'u32[]', space=smem, size = 0x4, offset = 0x4, fixed_abs, tag = 'smem constant byte address 0x4 - core index']
  #allocation1 [shape = 'u32[144,128]{1,0:T(1,128)}', space=vmem, size = 0x12000, scoped, tag = 'internal scratch']
  %s0 = inlined_call_operand.hbm [shape: f32[16,8], index: 0, kind: input, shape index: {}, may-alias: {0,1}]
  %s1 = inlined_call_operand.hbm [shape: f32[16,8], index: 1, kind: input, shape index: {}, may-alias: {0,1}]
  %s2 = inlined_call_operand.hbm [shape: f32[8,16,16], index: 2, kind: input, shape index: {}]
  %s3 = inlined_call_operand.hbm [shape: f32[8,8,8], index: 3, kind: output, shape index: {}]
  %s4 = sld [smem:[#allocation0]]
  $region34: #{resize_bilinear.1} parent=0
    _
  %s6 = ssub.s32 1, %s4
  %s7 = scalar_select 0, %s6, %s4
  $region1: #{resize_bilinear.1} parent=0
    #allocation2 [shape = 'u8[8192]{0}', space=vmem, size = 0x2000, scoped, tag = 'input window, operand 0, single buffered']
    #allocation3 [shape = 's32[1]{0}', space=sflag, size = 0x4, scoped, tag = 'scoped memory for resize_bilinear.1']
    #allocation4 [shape = 's32[1]{0}', space=sflag, size = 0x4, scoped, tag = 'scoped memory for resize_bilinear.1']
    #allocation5 [shape = 'u8[8192]{0}', space=vmem, size = 0x2000, scoped, tag = 'input window, operand 1, single buffered']
    #allocation6 [shape = 's32[1]{0}', space=sflag, size = 0x4, scoped, tag = 'scoped memory for resize_bilinear.1']
    #allocation7 [shape = 'u8[65536]{0}', space=vmem, size = 0x10000, scoped, tag = 'input window, operand 2, single buffered']
    #allocation8 [shape = 'u8[32768]{0}', space=vmem, size = 0x8000, scoped, tag = 'output window, operand 0, single buffered']
    %8 = vsyncpa [#allocation3], 0
    %9 = vsyncpa [#allocation6], 0
    %10 = vsyncpa [#allocation4], 0
    // Predicated region
    $region2: #{resize_bilinear.1} parent=1 // pred_check
      _
    $region3: #{resize_bilinear.1} parent=1 // pred_check_branch
      %12 = sbr.rel (0) target = $region5
    $region4: #{resize_bilinear.1} parent=1 // pred_region
      %s14 = ssub.s32 256, 256
      %15 = vsyncadd [#allocation3], %s14
      %s16 = sshll.u32 [#allocation2], 4
      %s17 = int_to_ptr.vmem [resolvable:$true] %s16
      %22 = dma.hbm_to_vmem [thread:$0]  %s0, 256, %s17, [#allocation3], 128, 128, 8
    $region5: #{resize_bilinear.1} parent=1 // pred_fallthru
      _
    // Predicated region
    $region6: #{resize_bilinear.1} parent=1 // pred_check
      _
    $region7: #{resize_bilinear.1} parent=1 // pred_check_branch
      %24 = sbr.rel (0) target = $region9
    $region8: #{resize_bilinear.1} parent=1 // pred_region
      %s26 = ssub.s32 256, 256
      %27 = vsyncadd [#allocation6], %s26
      %s28 = sshll.u32 [#allocation5], 4
      %s29 = int_to_ptr.vmem [resolvable:$true] %s28
      %34 = dma.hbm_to_vmem [thread:$0]  %s1, 256, %s29, [#allocation6], 128, 128, 8
    $region9: #{resize_bilinear.1} parent=1 // pred_fallthru
      _
    // Predicated region
    $region10: #{resize_bilinear.1} parent=1 // pred_check
      _
    $region11: #{resize_bilinear.1} parent=1 // pred_check_branch
      %36 = sbr.rel (0) target = $region13
    $region12: #{resize_bilinear.1} parent=1 // pred_region
      %s38 = ssub.s32 2048, 2048
      %39 = vsyncadd [#allocation6], %s38
      %s40 = sshll.u32 [#allocation7], 4
      %s41 = int_to_ptr.vmem [resolvable:$true] %s40
      %46 = dma.hbm_to_vmem [thread:$0]  %s2, 2048, %s41, [#allocation6], 128, 128, 8
    $region13: #{resize_bilinear.1} parent=1 // pred_fallthru
      _
    // Predicated region
    $region14: #{resize_bilinear.1} parent=1 // pred_check
      _
    $region15: #{resize_bilinear.1} parent=1 // pred_check_branch
      %48 = sbr.rel (0) target = $region17
    $region16: #{resize_bilinear.1} parent=1 // pred_region
      %49 = dma.done [#allocation3], 256
    $region17: #{resize_bilinear.1} parent=1 // pred_fallthru
      _
    // Predicated region
    $region18: #{resize_bilinear.1} parent=1 // pred_check
      _
    $region19: #{resize_bilinear.1} parent=1 // pred_check_branch
      %51 = sbr.rel (0) target = $region21
    $region20: #{resize_bilinear.1} parent=1 // pred_region
      %52 = dma.done [#allocation6], 256
    $region21: #{resize_bilinear.1} parent=1 // pred_fallthru
      _
    // Predicated region
    $region22: #{resize_bilinear.1} parent=1 // pred_check
      _
    $region23: #{resize_bilinear.1} parent=1 // pred_check_branch
      %54 = sbr.rel (0) target = $region25
    $region24: #{resize_bilinear.1} parent=1 // pred_region
      %55 = dma.done [#allocation6], 2048
    $region25: #{resize_bilinear.1} parent=1 // pred_fallthru
      _
    %v56 = vld [vmem:[#allocation7] sm:$0xff]
    %v57 = vld [vmem:[#allocation7 + $0x8] sm:$0xff]
    %v58 = vld [vmem:[#allocation7 + $0x10] sm:$0xff]
    %v59 = vld [vmem:[#allocation7 + $0x18] sm:$0xff]
    %v60 = vld [vmem:[#allocation7 + $0x20] sm:$0xff]
    %v61 = vld [vmem:[#allocation7 + $0x28] sm:$0xff]
    %v62 = vld [vmem:[#allocation7 + $0x30] sm:$0xff]
    %v63 = vld [vmem:[#allocation7 + $0x38] sm:$0xff]
    %v64 = vld [vmem:[#allocation7 + $0x40] sm:$0xff]
    %v65 = vld [vmem:[#allocation7 + $0x48] sm:$0xff]
    %v66 = vld [vmem:[#allocation7 + $0x50] sm:$0xff]
    %v67 = vld [vmem:[#allocation7 + $0x58] sm:$0xff]
    %v68 = vld [vmem:[#allocation7 + $0x60] sm:$0xff]
    %v69 = vld [vmem:[#allocation7 + $0x68] sm:$0xff]
    %v70 = vld [vmem:[#allocation7 + $0x70] sm:$0xff]
    %v71 = vld [vmem:[#allocation7 + $0x78] sm:$0xff]
    %v72 = vld [vmem:[#allocation5] sm:$0xff]
    %v73 = vld [vmem:[#allocation5 + $0x8] sm:$0xff]
    %vm74 = vcmask 130048
    %v76 = vsel %vm74, %v56, 0
    %v79 = vsel %vm74, %v57, 0
    %v82 = vsel %vm74, %v58, 0
    %v85 = vsel %vm74, %v59, 0
    %v88 = vsel %vm74, %v60, 0
    %v91 = vsel %vm74, %v61, 0
    %v94 = vsel %vm74, %v62, 0
    %v97 = vsel %vm74, %v63, 0
    %v100 = vsel %vm74, %v64, 0
    %v103 = vsel %vm74, %v65, 0
    %v106 = vsel %vm74, %v66, 0
    %v109 = vsel %vm74, %v67, 0
    %v112 = vsel %vm74, %v68, 0
    %v115 = vsel %vm74, %v69, 0
    %v118 = vsel %vm74, %v70, 0
    %v121 = vsel %vm74, %v71, 0
    %123 = vmatprep.subr.mxu0 0.0
    %124 = vmatpush1.msra.mxu0 %v72
    %125 = vmatprep.subr.mxu0 0.0
    %126 = vmatpush1.msra.mxu0 %v73
    %127 = vmatprep.subr.mxu0 0.0
    %128 = vmatpush1.msra.mxu0 0.0
    %129 = vmatprep.subr.mxu0 0.0
    %130 = vmatpush1.msra.mxu0 0.0
    %131 = vmatprep.subr.mxu0 0.0
    %132 = vmatpush1.msra.mxu0 0.0
    %133 = vmatprep.subr.mxu0 0.0
    %134 = vmatpush1.msra.mxu0 0.0
    %135 = vmatprep.subr.mxu0 0.0
    %136 = vmatpush1.msra.mxu0 0.0
    %137 = vmatprep.subr.mxu0 0.0
    %138 = vmatpush1.msra.mxu0 0.0
    %139 = vmatprep.subr.mxu0 0.0
    %140 = vmatpush1.msra.mxu0 0.0
    %141 = vmatprep.subr.mxu0 0.0
    %142 = vmatpush1.msra.mxu0 0.0
    %143 = vmatprep.subr.mxu0 0.0
    %144 = vmatpush1.msra.mxu0 0.0
    %145 = vmatprep.subr.mxu0 0.0
    %146 = vmatpush1.msra.mxu0 0.0
    %147 = vmatprep.subr.mxu0 0.0
    %148 = vmatpush1.msra.mxu0 0.0
    %149 = vmatprep.subr.mxu0 0.0
    %150 = vmatpush1.msra.mxu0 0.0
    %151 = vmatprep.subr.mxu0 0.0
    %152 = vmatpush1.msra.mxu0 0.0
    %153 = vmatprep.subr.mxu0 0.0
    %154 = vmatpush1.msra.mxu0 0.0
    %155 = vmatprep.subr.mxu0 0.0
    %156 = vmatpush1.msra.mxu0 0.0
    %157 = vmatprep.subr.mxu0 0.0
    %158 = vmatpush1.msra.mxu0 0.0
    %159 = vmatprep.subr.mxu0 0.0
    %160 = vmatpush1.msra.mxu0 0.0
    %161 = vmatprep.subr.mxu0 0.0
    %162 = vmatpush1.msra.mxu0 0.0
    %163 = vmatprep.subr.mxu0 0.0
    %164 = vmatpush1.msra.mxu0 0.0
    %165 = vmatprep.subr.mxu0 0.0
    %166 = vmatpush1.msra.mxu0 0.0
    %167 = vmatprep.subr.mxu0 0.0
    %168 = vmatpush1.msra.mxu0 0.0
    %169 = vmatprep.subr.mxu0 0.0
    %170 = vmatpush1.msra.mxu0 0.0
    %171 = vmatprep.subr.mxu0 0.0
    %172 = vmatpush1.msra.mxu0 0.0
    %173 = vmatprep.subr.mxu0 0.0
    %174 = vmatpush1.msra.mxu0 0.0
    %175 = vmatprep.subr.mxu0 0.0
    %176 = vmatpush1.msra.mxu0 0.0
    %177 = vmatprep.subr.mxu0 0.0
    %178 = vmatpush1.msra.mxu0 0.0
    %179 = vmatprep.subr.mxu0 0.0
    %180 = vmatpush1.msra.mxu0 0.0
    %181 = vmatprep.subr.mxu0 0.0
    %182 = vmatpush1.msra.mxu0 0.0
    %183 = vmatprep.subr.mxu0 0.0
    %184 = vmatpush1.msra.mxu0 0.0
    %185 = vmatprep.subr.mxu0 0.0
    %186 = vmatpush1.msra.mxu0 0.0
    %187 = vmatprep.mubr.f32.mxu0 0.0
    %188 = vmatmul.mubr.f32.gmra.mrb[0].mxu0 %v76
    %v189 = vpop.f32.mrb[0].mxu0
    %v190 = vadd.f32 0.0, %v189
    %v191 = vpop.f32.mrb[0].mxu0
    %192 = vmatprep.mubr.f32.mxu0 0.0
    %193 = vmatmul.mubr.f32.gmra.mrb[0].mxu0 %v79
    %v194 = vpop.f32.mrb[0].mxu0
    %v195 = vadd.f32 0.0, %v194
    %v196 = vpop.f32.mrb[0].mxu0
    %197 = vmatprep.mubr.f32.mxu0 0.0
    %198 = vmatmul.mubr.f32.gmra.mrb[0].mxu0 %v82
    %v199 = vpop.f32.mrb[0].mxu0
    %v200 = vadd.f32 0.0, %v199
    %v201 = vpop.f32.mrb[0].mxu0
    %202 = vmatprep.mubr.f32.mxu0 0.0
    %203 = vmatmul.mubr.f32.gmra.mrb[0].mxu0 %v85
    %v204 = vpop.f32.mrb[0].mxu0
    %v205 = vadd.f32 0.0, %v204
    %v206 = vpop.f32.mrb[0].mxu0
    %207 = vmatprep.mubr.f32.mxu0 0.0
    %208 = vmatmul.mubr.f32.gmra.mrb[0].mxu0 %v88
    %v209 = vpop.f32.mrb[0].mxu0
    %v210 = vadd.f32 0.0, %v209
    %v211 = vpop.f32.mrb[0].mxu0
    %212 = vmatprep.mubr.f32.mxu0 0.0
    %213 = vmatmul.mubr.f32.gmra.mrb[0].mxu0 %v91
    %v214 = vpop.f32.mrb[0].mxu0
    %v215 = vadd.f32 0.0, %v214
    %v216 = vpop.f32.mrb[0].mxu0
    %217 = vmatprep.mubr.f32.mxu0 0.0
    %218 = vmatmul.mubr.f32.gmra.mrb[0].mxu0 %v94
    %v219 = vpop.f32.mrb[0].mxu0
    %v220 = vadd.f32 0.0, %v219
    %v221 = vpop.f32.mrb[0].mxu0
    %222 = vmatprep.mubr.f32.mxu0 0.0
    %223 = vmatmul.mubr.f32.gmra.mrb[0].mxu0 %v97
    %v224 = vpop.f32.mrb[0].mxu0
    %v225 = vadd.f32 0.0, %v224
    %v226 = vpop.f32.mrb[0].mxu0
    %227 = vmatprep.mubr.f32.mxu0 0.0
    %228 = vmatmul.mubr.f32.gmra.mrb[0].mxu0 %v100
    %v229 = vpop.f32.mrb[0].mxu0
    %v230 = vadd.f32 0.0, %v229
    %v231 = vpop.f32.mrb[0].mxu0
    %232 = vmatprep.mubr.f32.mxu0 0.0
    %233 = vmatmul.mubr.f32.gmra.mrb[0].mxu0 %v103
    %v234 = vpop.f32.mrb[0].mxu0
    %v235 = vadd.f32 0.0, %v234
    %v236 = vpop.f32.mrb[0].mxu0
    %237 = vmatprep.mubr.f32.mxu0 0.0
    %238 = vmatmul.mubr.f32.gmra.mrb[0].mxu0 %v106
    %v239 = vpop.f32.mrb[0].mxu0
    %v240 = vadd.f32 0.0, %v239
    %v241 = vpop.f32.mrb[0].mxu0
    %242 = vmatprep.mubr.f32.mxu0 0.0
    %243 = vmatmul.mubr.f32.gmra.mrb[0].mxu0 %v109
    %v244 = vpop.f32.mrb[0].mxu0
    %v245 = vadd.f32 0.0, %v244
    %v246 = vpop.f32.mrb[0].mxu0
    %247 = vmatprep.mubr.f32.mxu0 0.0
    %248 = vmatmul.mubr.f32.gmra.mrb[0].mxu0 %v112
    %v249 = vpop.f32.mrb[0].mxu0
    %v250 = vadd.f32 0.0, %v249
    %v251 = vpop.f32.mrb[0].mxu0
    %252 = vmatprep.mubr.f32.mxu0 0.0
    %253 = vmatmul.mubr.f32.gmra.mrb[0].mxu0 %v115
    %v254 = vpop.f32.mrb[0].mxu0
    %v255 = vadd.f32 0.0, %v254
    %v256 = vpop.f32.mrb[0].mxu0
    %257 = vmatprep.mubr.f32.mxu0 0.0
    %258 = vmatmul.mubr.f32.gmra.mrb[0].mxu0 %v118
    %v259 = vpop.f32.mrb[0].mxu0
    %v260 = vadd.f32 0.0, %v259
    %v261 = vpop.f32.mrb[0].mxu0
    %262 = vmatprep.mubr.f32.mxu0 0.0
    %263 = vmatmul.mubr.f32.gmra.mrb[0].mxu0 %v121
    %v264 = vpop.f32.mrb[0].mxu0
    %v265 = vadd.f32 0.0, %v264
    %v266 = vpop.f32.mrb[0].mxu0
    %267 = vdwg.mxu0
    %268 = vxpose.xlu0.b32.start [1/16] %v190, 128
    %269 = vxpose.xlu0.b32.cont [2/16] %v195, 128
    %270 = vxpose.xlu0.b32.cont [3/16] 0.0, 128
    %271 = vxpose.xlu0.b32.cont [4/16] 0.0, 128
    %272 = vxpose.xlu0.b32.cont [5/16] 0.0, 128
    %273 = vxpose.xlu0.b32.cont [6/16] 0.0, 128
    %274 = vxpose.xlu0.b32.cont [7/16] 0.0, 128
    %275 = vxpose.xlu0.b32.cont [8/16] 0.0, 128
    %276 = vxpose.xlu0.b32.cont [9/16] 0.0, 128
    %277 = vxpose.xlu0.b32.cont [10/16] 0.0, 128
    %278 = vxpose.xlu0.b32.cont [11/16] 0.0, 128
    %279 = vxpose.xlu0.b32.cont [12/16] 0.0, 128
    %280 = vxpose.xlu0.b32.cont [13/16] 0.0, 128
    %281 = vxpose.xlu0.b32.cont [14/16] 0.0, 128
    %282 = vxpose.xlu0.b32.cont [15/16] 0.0, 128
    %283 = vxpose.xlu0.b32.end [16/16] 0.0, 128
    %v284 = vpop.trf.xlu0
    %v285 = vpop.trf.xlu0
    %v286 = vpop.trf.xlu0
    %v287 = vpop.trf.xlu0
    %v288 = vpop.trf.xlu0
    %v289 = vpop.trf.xlu0
    %v290 = vpop.trf.xlu0
    %v291 = vpop.trf.xlu0
    %v292 = vpop.trf.xlu0
    %v293 = vpop.trf.xlu0
    %v294 = vpop.trf.xlu0
    %v295 = vpop.trf.xlu0
    %v296 = vpop.trf.xlu0
    %v297 = vpop.trf.xlu0
    %v298 = vpop.trf.xlu0
    %v299 = vpop.trf.xlu0
    %300 = vxpose.xlu0.b32.start [1/16] %v200, 128
    %301 = vxpose.xlu0.b32.cont [2/16] %v205, 128
    %302 = vxpose.xlu0.b32.cont [3/16] 0.0, 128
    %303 = vxpose.xlu0.b32.cont [4/16] 0.0, 128
    %304 = vxpose.xlu0.b32.cont [5/16] 0.0, 128
    %305 = vxpose.xlu0.b32.cont [6/16] 0.0, 128
    %306 = vxpose.xlu0.b32.cont [7/16] 0.0, 128
    %307 = vxpose.xlu0.b32.cont [8/16] 0.0, 128
    %308 = vxpose.xlu0.b32.cont [9/16] 0.0, 128
    %309 = vxpose.xlu0.b32.cont [10/16] 0.0, 128
    %310 = vxpose.xlu0.b32.cont [11/16] 0.0, 128
    %311 = vxpose.xlu0.b32.cont [12/16] 0.0, 128
    %312 = vxpose.xlu0.b32.cont [13/16] 0.0, 128
    %313 = vxpose.xlu0.b32.cont [14/16] 0.0, 128
    %314 = vxpose.xlu0.b32.cont [15/16] 0.0, 128
    %315 = vxpose.xlu0.b32.end [16/16] 0.0, 128
    %v316 = vpop.trf.xlu0
    %v317 = vpop.trf.xlu0
    %v318 = vpop.trf.xlu0
    %v319 = vpop.trf.xlu0
    %v320 = vpop.trf.xlu0
    %v321 = vpop.trf.xlu0
    %v322 = vpop.trf.xlu0
    %v323 = vpop.trf.xlu0
    %v324 = vpop.trf.xlu0
    %v325 = vpop.trf.xlu0
    %v326 = vpop.trf.xlu0
    %v327 = vpop.trf.xlu0
    %v328 = vpop.trf.xlu0
    %v329 = vpop.trf.xlu0
    %v330 = vpop.trf.xlu0
    %v331 = vpop.trf.xlu0
    %332 = vxpose.xlu0.b32.start [1/16] %v210, 128
    %333 = vxpose.xlu0.b32.cont [2/16] %v215, 128
    %334 = vxpose.xlu0.b32.cont [3/16] 0.0, 128
    %335 = vxpose.xlu0.b32.cont [4/16] 0.0, 128
    %336 = vxpose.xlu0.b32.cont [5/16] 0.0, 128
    %337 = vxpose.xlu0.b32.cont [6/16] 0.0, 128
    %338 = vxpose.xlu0.b32.cont [7/16] 0.0, 128
    %339 = vxpose.xlu0.b32.cont [8/16] 0.0, 128
    %340 = vxpose.xlu0.b32.cont [9/16] 0.0, 128
    %341 = vxpose.xlu0.b32.cont [10/16] 0.0, 128
    %342 = vxpose.xlu0.b32.cont [11/16] 0.0, 128
    %343 = vxpose.xlu0.b32.cont [12/16] 0.0, 128
    %344 = vxpose.xlu0.b32.cont [13/16] 0.0, 128
    %345 = vxpose.xlu0.b32.cont [14/16] 0.0, 128
    %346 = vxpose.xlu0.b32.cont [15/16] 0.0, 128
    %347 = vxpose.xlu0.b32.end [16/16] 0.0, 128
    %v348 = vpop.trf.xlu0
    %v349 = vpop.trf.xlu0
    %v350 = vpop.trf.xlu0
    %v351 = vpop.trf.xlu0
    %v352 = vpop.trf.xlu0
    %v353 = vpop.trf.xlu0
    %v354 = vpop.trf.xlu0
    %v355 = vpop.trf.xlu0
    %v356 = vpop.trf.xlu0
    %v357 = vpop.trf.xlu0
    %v358 = vpop.trf.xlu0
    %v359 = vpop.trf.xlu0
    %v360 = vpop.trf.xlu0
    %v361 = vpop.trf.xlu0
    %v362 = vpop.trf.xlu0
    %v363 = vpop.trf.xlu0
    %364 = vxpose.xlu0.b32.start [1/16] %v220, 128
    %365 = vxpose.xlu0.b32.cont [2/16] %v225, 128
    %366 = vxpose.xlu0.b32.cont [3/16] 0.0, 128
    %367 = vxpose.xlu0.b32.cont [4/16] 0.0, 128
    %368 = vxpose.xlu0.b32.cont [5/16] 0.0, 128
    %369 = vxpose.xlu0.b32.cont [6/16] 0.0, 128
    %370 = vxpose.xlu0.b32.cont [7/16] 0.0, 128
    %371 = vxpose.xlu0.b32.cont [8/16] 0.0, 128
    %372 = vxpose.xlu0.b32.cont [9/16] 0.0, 128
    %373 = vxpose.xlu0.b32.cont [10/16] 0.0, 128
    %374 = vxpose.xlu0.b32.cont [11/16] 0.0, 128
    %375 = vxpose.xlu0.b32.cont [12/16] 0.0, 128
    %376 = vxpose.xlu0.b32.cont [13/16] 0.0, 128
    %377 = vxpose.xlu0.b32.cont [14/16] 0.0, 128
    %378 = vxpose.xlu0.b32.cont [15/16] 0.0, 128
    %379 = vxpose.xlu0.b32.end [16/16] 0.0, 128
    %v380 = vpop.trf.xlu0
    %v381 = vpop.trf.xlu0
    %v382 = vpop.trf.xlu0
    %v383 = vpop.trf.xlu0
    %v384 = vpop.trf.xlu0
    %v385 = vpop.trf.xlu0
    %v386 = vpop.trf.xlu0
    %v387 = vpop.trf.xlu0
    %v388 = vpop.trf.xlu0
    %v389 = vpop.trf.xlu0
    %v390 = vpop.trf.xlu0
    %v391 = vpop.trf.xlu0
    %v392 = vpop.trf.xlu0
    %v393 = vpop.trf.xlu0
    %v394 = vpop.trf.xlu0
    %v395 = vpop.trf.xlu0
    %396 = vxpose.xlu0.b32.start [1/16] %v230, 128
    %397 = vxpose.xlu0.b32.cont [2/16] %v235, 128
    %398 = vxpose.xlu0.b32.cont [3/16] 0.0, 128
    %399 = vxpose.xlu0.b32.cont [4/16] 0.0, 128
    %400 = vxpose.xlu0.b32.cont [5/16] 0.0, 128
    %401 = vxpose.xlu0.b32.cont [6/16] 0.0, 128
    %402 = vxpose.xlu0.b32.cont [7/16] 0.0, 128
    %403 = vxpose.xlu0.b32.cont [8/16] 0.0, 128
    %404 = vxpose.xlu0.b32.cont [9/16] 0.0, 128
    %405 = vxpose.xlu0.b32.cont [10/16] 0.0, 128
    %406 = vxpose.xlu0.b32.cont [11/16] 0.0, 128
    %407 = vxpose.xlu0.b32.cont [12/16] 0.0, 128
    %408 = vxpose.xlu0.b32.cont [13/16] 0.0, 128
    %409 = vxpose.xlu0.b32.cont [14/16] 0.0, 128
    %410 = vxpose.xlu0.b32.cont [15/16] 0.0, 128
    %411 = vxpose.xlu0.b32.end [16/16] 0.0, 128
    %v412 = vpop.trf.xlu0
    %v413 = vpop.trf.xlu0
    %v414 = vpop.trf.xlu0
    %v415 = vpop.trf.xlu0
    %v416 = vpop.trf.xlu0
    %v417 = vpop.trf.xlu0
    %v418 = vpop.trf.xlu0
    %v419 = vpop.trf.xlu0
    %v420 = vpop.trf.xlu0
    %v421 = vpop.trf.xlu0
    %v422 = vpop.trf.xlu0
    %v423 = vpop.trf.xlu0
    %v424 = vpop.trf.xlu0
    %v425 = vpop.trf.xlu0
    %v426 = vpop.trf.xlu0
    %v427 = vpop.trf.xlu0
    %428 = vxpose.xlu0.b32.start [1/16] %v240, 128
    %429 = vxpose.xlu0.b32.cont [2/16] %v245, 128
    %430 = vxpose.xlu0.b32.cont [3/16] 0.0, 128
    %431 = vxpose.xlu0.b32.cont [4/16] 0.0, 128
    %432 = vxpose.xlu0.b32.cont [5/16] 0.0, 128
    %433 = vxpose.xlu0.b32.cont [6/16] 0.0, 128
    %434 = vxpose.xlu0.b32.cont [7/16] 0.0, 128
    %435 = vxpose.xlu0.b32.cont [8/16] 0.0, 128
    %436 = vxpose.xlu0.b32.cont [9/16] 0.0, 128
    %437 = vxpose.xlu0.b32.cont [10/16] 0.0, 128
    %438 = vxpose.xlu0.b32.cont [11/16] 0.0, 128
    %439 = vxpose.xlu0.b32.cont [12/16] 0.0, 128
    %440 = vxpose.xlu0.b32.cont [13/16] 0.0, 128
    %441 = vxpose.xlu0.b32.cont [14/16] 0.0, 128
    %442 = vxpose.xlu0.b32.cont [15/16] 0.0, 128
    %443 = vxpose.xlu0.b32.end [16/16] 0.0, 128
    %v444 = vpop.trf.xlu0
    %v445 = vpop.trf.xlu0
    %v446 = vpop.trf.xlu0
    %v447 = vpop.trf.xlu0
    %v448 = vpop.trf.xlu0
    %v449 = vpop.trf.xlu0
    %v450 = vpop.trf.xlu0
    %v451 = vpop.trf.xlu0
    %v452 = vpop.trf.xlu0
    %v453 = vpop.trf.xlu0
    %v454 = vpop.trf.xlu0
    %v455 = vpop.trf.xlu0
    %v456 = vpop.trf.xlu0
    %v457 = vpop.trf.xlu0
    %v458 = vpop.trf.xlu0
    %v459 = vpop.trf.xlu0
    %460 = vxpose.xlu0.b32.start [1/16] %v250, 128
    %461 = vxpose.xlu0.b32.cont [2/16] %v255, 128
    %462 = vxpose.xlu0.b32.cont [3/16] 0.0, 128
    %463 = vxpose.xlu0.b32.cont [4/16] 0.0, 128
    %464 = vxpose.xlu0.b32.cont [5/16] 0.0, 128
    %465 = vxpose.xlu0.b32.cont [6/16] 0.0, 128
    %466 = vxpose.xlu0.b32.cont [7/16] 0.0, 128
    %467 = vxpose.xlu0.b32.cont [8/16] 0.0, 128
    %468 = vxpose.xlu0.b32.cont [9/16] 0.0, 128
    %469 = vxpose.xlu0.b32.cont [10/16] 0.0, 128
    %470 = vxpose.xlu0.b32.cont [11/16] 0.0, 128
    %471 = vxpose.xlu0.b32.cont [12/16] 0.0, 128
    %472 = vxpose.xlu0.b32.cont [13/16] 0.0, 128
    %473 = vxpose.xlu0.b32.cont [14/16] 0.0, 128
    %474 = vxpose.xlu0.b32.cont [15/16] 0.0, 128
    %475 = vxpose.xlu0.b32.end [16/16] 0.0, 128
    %v476 = vpop.trf.xlu0
    %v477 = vpop.trf.xlu0
    %v478 = vpop.trf.xlu0
    %v479 = vpop.trf.xlu0
    %v480 = vpop.trf.xlu0
    %v481 = vpop.trf.xlu0
    %v482 = vpop.trf.xlu0
    %v483 = vpop.trf.xlu0
    %v484 = vpop.trf.xlu0
    %v485 = vpop.trf.xlu0
    %v486 = vpop.trf.xlu0
    %v487 = vpop.trf.xlu0
    %v488 = vpop.trf.xlu0
    %v489 = vpop.trf.xlu0
    %v490 = vpop.trf.xlu0
    %v491 = vpop.trf.xlu0
    %492 = vxpose.xlu0.b32.start [1/16] %v260, 128
    %493 = vxpose.xlu0.b32.cont [2/16] %v265, 128
    %494 = vxpose.xlu0.b32.cont [3/16] 0.0, 128
    %495 = vxpose.xlu0.b32.cont [4/16] 0.0, 128
    %496 = vxpose.xlu0.b32.cont [5/16] 0.0, 128
    %497 = vxpose.xlu0.b32.cont [6/16] 0.0, 128
    %498 = vxpose.xlu0.b32.cont [7/16] 0.0, 128
    %499 = vxpose.xlu0.b32.cont [8/16] 0.0, 128
    %500 = vxpose.xlu0.b32.cont [9/16] 0.0, 128
    %501 = vxpose.xlu0.b32.cont [10/16] 0.0, 128
    %502 = vxpose.xlu0.b32.cont [11/16] 0.0, 128
    %503 = vxpose.xlu0.b32.cont [12/16] 0.0, 128
    %504 = vxpose.xlu0.b32.cont [13/16] 0.0, 128
    %505 = vxpose.xlu0.b32.cont [14/16] 0.0, 128
    %506 = vxpose.xlu0.b32.cont [15/16] 0.0, 128
    %507 = vxpose.xlu0.b32.end [16/16] 0.0, 128
    %v508 = vpop.trf.xlu0
    %v509 = vpop.trf.xlu0
    %v510 = vpop.trf.xlu0
    %v511 = vpop.trf.xlu0
    %v512 = vpop.trf.xlu0
    %v513 = vpop.trf.xlu0
    %v514 = vpop.trf.xlu0
    %v515 = vpop.trf.xlu0
    %v516 = vpop.trf.xlu0
    %v517 = vpop.trf.xlu0
    %v518 = vpop.trf.xlu0
    %v519 = vpop.trf.xlu0
    %v520 = vpop.trf.xlu0
    %v521 = vpop.trf.xlu0
    %v522 = vpop.trf.xlu0
    %v523 = vpop.trf.xlu0
    %v524 = vld [vmem:[#allocation2] sm:$0xff]
    %v525 = vld [vmem:[#allocation2 + $0x8] sm:$0xff]
    %v527 = vsel %vm74, %v284, 0
    %v530 = vsel %vm74, %v316, 0
    %v533 = vsel %vm74, %v348, 0
    %v536 = vsel %vm74, %v380, 0
    %v539 = vsel %vm74, %v412, 0
    %v542 = vsel %vm74, %v444, 0
    %v545 = vsel %vm74, %v476, 0
    %v548 = vsel %vm74, %v508, 0
    %550 = vmatprep.subr.mxu0 0.0
    %551 = vmatpush1.msra.mxu0 %v524
    %552 = vmatprep.subr.mxu0 0.0
    %553 = vmatpush1.msra.mxu0 %v525
    %554 = vmatprep.subr.mxu0 0.0
    %555 = vmatpush1.msra.mxu0 0.0
    %556 = vmatprep.subr.mxu0 0.0
    %557 = vmatpush1.msra.mxu0 0.0
    %558 = vmatprep.subr.mxu0 0.0
    %559 = vmatpush1.msra.mxu0 0.0
    %560 = vmatprep.subr.mxu0 0.0
    %561 = vmatpush1.msra.mxu0 0.0
    %562 = vmatprep.subr.mxu0 0.0
    %563 = vmatpush1.msra.mxu0 0.0
    %564 = vmatprep.subr.mxu0 0.0
    %565 = vmatpush1.msra.mxu0 0.0
    %566 = vmatprep.subr.mxu0 0.0
    %567 = vmatpush1.msra.mxu0 0.0
    %568 = vmatprep.subr.mxu0 0.0
    %569 = vmatpush1.msra.mxu0 0.0
    %570 = vmatprep.subr.mxu0 0.0
    %571 = vmatpush1.msra.mxu0 0.0
    %572 = vmatprep.subr.mxu0 0.0
    %573 = vmatpush1.msra.mxu0 0.0
    %574 = vmatprep.subr.mxu0 0.0
    %575 = vmatpush1.msra.mxu0 0.0
    %576 = vmatprep.subr.mxu0 0.0
    %577 = vmatpush1.msra.mxu0 0.0
    %578 = vmatprep.subr.mxu0 0.0
    %579 = vmatpush1.msra.mxu0 0.0
    %580 = vmatprep.subr.mxu0 0.0
    %581 = vmatpush1.msra.mxu0 0.0
    %582 = vmatprep.subr.mxu0 0.0
    %583 = vmatpush1.msra.mxu0 0.0
    %584 = vmatprep.subr.mxu0 0.0
    %585 = vmatpush1.msra.mxu0 0.0
    %586 = vmatprep.subr.mxu0 0.0
    %587 = vmatpush1.msra.mxu0 0.0
    %588 = vmatprep.subr.mxu0 0.0
    %589 = vmatpush1.msra.mxu0 0.0
    %590 = vmatprep.subr.mxu0 0.0
    %591 = vmatpush1.msra.mxu0 0.0
    %592 = vmatprep.subr.mxu0 0.0
    %593 = vmatpush1.msra.mxu0 0.0
    %594 = vmatprep.subr.mxu0 0.0
    %595 = vmatpush1.msra.mxu0 0.0
    %596 = vmatprep.subr.mxu0 0.0
    %597 = vmatpush1.msra.mxu0 0.0
    %598 = vmatprep.subr.mxu0 0.0
    %599 = vmatpush1.msra.mxu0 0.0
    %600 = vmatprep.subr.mxu0 0.0
    %601 = vmatpush1.msra.mxu0 0.0
    %602 = vmatprep.subr.mxu0 0.0
    %603 = vmatpush1.msra.mxu0 0.0
    %604 = vmatprep.subr.mxu0 0.0
    %605 = vmatpush1.msra.mxu0 0.0
    %606 = vmatprep.subr.mxu0 0.0
    %607 = vmatpush1.msra.mxu0 0.0
    %608 = vmatprep.subr.mxu0 0.0
    %609 = vmatpush1.msra.mxu0 0.0
    %610 = vmatprep.subr.mxu0 0.0
    %611 = vmatpush1.msra.mxu0 0.0
    %612 = vmatprep.subr.mxu0 0.0
    %613 = vmatpush1.msra.mxu0 0.0
    %614 = vmatprep.mubr.f32.mxu0 0.0
    %615 = vmatmul.mubr.f32.gmra.mrb[0].mxu0 %v527
    %v616 = vpop.f32.mrb[0].mxu0
    %v617 = vadd.f32 0.0, %v616
    %v618 = vpop.f32.mrb[0].mxu0
    %619 = vmatprep.mubr.f32.mxu0 0.0
    %620 = vmatmul.mubr.f32.gmra.mrb[0].mxu0 %v530
    %v621 = vpop.f32.mrb[0].mxu0
    %v622 = vadd.f32 0.0, %v621
    %v623 = vpop.f32.mrb[0].mxu0
    %624 = vmatprep.mubr.f32.mxu0 0.0
    %625 = vmatmul.mubr.f32.gmra.mrb[0].mxu0 %v533
    %v626 = vpop.f32.mrb[0].mxu0
    %v627 = vadd.f32 0.0, %v626
    %v628 = vpop.f32.mrb[0].mxu0
    %629 = vmatprep.mubr.f32.mxu0 0.0
    %630 = vmatmul.mubr.f32.gmra.mrb[0].mxu0 %v536
    %v631 = vpop.f32.mrb[0].mxu0
    %v632 = vadd.f32 0.0, %v631
    %v633 = vpop.f32.mrb[0].mxu0
    %634 = vmatprep.mubr.f32.mxu0 0.0
    %635 = vmatmul.mubr.f32.gmra.mrb[0].mxu0 %v539
    %v636 = vpop.f32.mrb[0].mxu0
    %v637 = vadd.f32 0.0, %v636
    %v638 = vpop.f32.mrb[0].mxu0
    %639 = vmatprep.mubr.f32.mxu0 0.0
    %640 = vmatmul.mubr.f32.gmra.mrb[0].mxu0 %v542
    %v641 = vpop.f32.mrb[0].mxu0
    %v642 = vadd.f32 0.0, %v641
    %v643 = vpop.f32.mrb[0].mxu0
    %644 = vmatprep.mubr.f32.mxu0 0.0
    %645 = vmatmul.mubr.f32.gmra.mrb[0].mxu0 %v545
    %v646 = vpop.f32.mrb[0].mxu0
    %v647 = vadd.f32 0.0, %v646
    %v648 = vpop.f32.mrb[0].mxu0
    %649 = vmatprep.mubr.f32.mxu0 0.0
    %650 = vmatmul.mubr.f32.gmra.mrb[0].mxu0 %v548
    %v651 = vpop.f32.mrb[0].mxu0
    %v652 = vadd.f32 0.0, %v651
    %v653 = vpop.f32.mrb[0].mxu0
    %654 = vdwg.mxu0
    %655 = vxpose.xlu0.b32.start [1/16] %v617, 128
    %656 = vxpose.xlu0.b32.cont [2/16] 0.0, 128
    %657 = vxpose.xlu0.b32.cont [3/16] 0.0, 128
    %658 = vxpose.xlu0.b32.cont [4/16] 0.0, 128
    %659 = vxpose.xlu0.b32.cont [5/16] 0.0, 128
    %660 = vxpose.xlu0.b32.cont [6/16] 0.0, 128
    %661 = vxpose.xlu0.b32.cont [7/16] 0.0, 128
    %662 = vxpose.xlu0.b32.cont [8/16] 0.0, 128
    %663 = vxpose.xlu0.b32.cont [9/16] 0.0, 128
    %664 = vxpose.xlu0.b32.cont [10/16] 0.0, 128
    %665 = vxpose.xlu0.b32.cont [11/16] 0.0, 128
    %666 = vxpose.xlu0.b32.cont [12/16] 0.0, 128
    %667 = vxpose.xlu0.b32.cont [13/16] 0.0, 128
    %668 = vxpose.xlu0.b32.cont [14/16] 0.0, 128
    %669 = vxpose.xlu0.b32.cont [15/16] 0.0, 128
    %670 = vxpose.xlu0.b32.end [16/16] 0.0, 128
    %v671 = vpop.trf.xlu0
    %v672 = vpop.trf.xlu0
    %v673 = vpop.trf.xlu0
    %v674 = vpop.trf.xlu0
    %v675 = vpop.trf.xlu0
    %v676 = vpop.trf.xlu0
    %v677 = vpop.trf.xlu0
    %v678 = vpop.trf.xlu0
    %v679 = vpop.trf.xlu0
    %v680 = vpop.trf.xlu0
    %v681 = vpop.trf.xlu0
    %v682 = vpop.trf.xlu0
    %v683 = vpop.trf.xlu0
    %v684 = vpop.trf.xlu0
    %v685 = vpop.trf.xlu0
    %v686 = vpop.trf.xlu0
    %687 = vxpose.xlu0.b32.start [1/16] %v622, 128
    %688 = vxpose.xlu0.b32.cont [2/16] 0.0, 128
    %689 = vxpose.xlu0.b32.cont [3/16] 0.0, 128
    %690 = vxpose.xlu0.b32.cont [4/16] 0.0, 128
    %691 = vxpose.xlu0.b32.cont [5/16] 0.0, 128
    %692 = vxpose.xlu0.b32.cont [6/16] 0.0, 128
    %693 = vxpose.xlu0.b32.cont [7/16] 0.0, 128
    %694 = vxpose.xlu0.b32.cont [8/16] 0.0, 128
    %695 = vxpose.xlu0.b32.cont [9/16] 0.0, 128
    %696 = vxpose.xlu0.b32.cont [10/16] 0.0, 128
    %697 = vxpose.xlu0.b32.cont [11/16] 0.0, 128
    %698 = vxpose.xlu0.b32.cont [12/16] 0.0, 128
    %699 = vxpose.xlu0.b32.cont [13/16] 0.0, 128
    %700 = vxpose.xlu0.b32.cont [14/16] 0.0, 128
    %701 = vxpose.xlu0.b32.cont [15/16] 0.0, 128
    %702 = vxpose.xlu0.b32.end [16/16] 0.0, 128
    %v703 = vpop.trf.xlu0
    %v704 = vpop.trf.xlu0
    %v705 = vpop.trf.xlu0
    %v706 = vpop.trf.xlu0
    %v707 = vpop.trf.xlu0
    %v708 = vpop.trf.xlu0
    %v709 = vpop.trf.xlu0
    %v710 = vpop.trf.xlu0
    %v711 = vpop.trf.xlu0
    %v712 = vpop.trf.xlu0
    %v713 = vpop.trf.xlu0
    %v714 = vpop.trf.xlu0
    %v715 = vpop.trf.xlu0
    %v716 = vpop.trf.xlu0
    %v717 = vpop.trf.xlu0
    %v718 = vpop.trf.xlu0
    %719 = vxpose.xlu0.b32.start [1/16] %v627, 128
    %720 = vxpose.xlu0.b32.cont [2/16] 0.0, 128
    %721 = vxpose.xlu0.b32.cont [3/16] 0.0, 128
    %722 = vxpose.xlu0.b32.cont [4/16] 0.0, 128
    %723 = vxpose.xlu0.b32.cont [5/16] 0.0, 128
    %724 = vxpose.xlu0.b32.cont [6/16] 0.0, 128
    %725 = vxpose.xlu0.b32.cont [7/16] 0.0, 128
    %726 = vxpose.xlu0.b32.cont [8/16] 0.0, 128
    %727 = vxpose.xlu0.b32.cont [9/16] 0.0, 128
    %728 = vxpose.xlu0.b32.cont [10/16] 0.0, 128
    %729 = vxpose.xlu0.b32.cont [11/16] 0.0, 128
    %730 = vxpose.xlu0.b32.cont [12/16] 0.0, 128
    %731 = vxpose.xlu0.b32.cont [13/16] 0.0, 128
    %732 = vxpose.xlu0.b32.cont [14/16] 0.0, 128
    %733 = vxpose.xlu0.b32.cont [15/16] 0.0, 128
    %734 = vxpose.xlu0.b32.end [16/16] 0.0, 128
    %v735 = vpop.trf.xlu0
    %v736 = vpop.trf.xlu0
    %v737 = vpop.trf.xlu0
    %v738 = vpop.trf.xlu0
    %v739 = vpop.trf.xlu0
    %v740 = vpop.trf.xlu0
    %v741 = vpop.trf.xlu0
    %v742 = vpop.trf.xlu0
    %v743 = vpop.trf.xlu0
    %v744 = vpop.trf.xlu0
    %v745 = vpop.trf.xlu0
    %v746 = vpop.trf.xlu0
    %v747 = vpop.trf.xlu0
    %v748 = vpop.trf.xlu0
    %v749 = vpop.trf.xlu0
    %v750 = vpop.trf.xlu0
    %751 = vxpose.xlu0.b32.start [1/16] %v632, 128
    %752 = vxpose.xlu0.b32.cont [2/16] 0.0, 128
    %753 = vxpose.xlu0.b32.cont [3/16] 0.0, 128
    %754 = vxpose.xlu0.b32.cont [4/16] 0.0, 128
    %755 = vxpose.xlu0.b32.cont [5/16] 0.0, 128
    %756 = vxpose.xlu0.b32.cont [6/16] 0.0, 128
    %757 = vxpose.xlu0.b32.cont [7/16] 0.0, 128
    %758 = vxpose.xlu0.b32.cont [8/16] 0.0, 128
    %759 = vxpose.xlu0.b32.cont [9/16] 0.0, 128
    %760 = vxpose.xlu0.b32.cont [10/16] 0.0, 128
    %761 = vxpose.xlu0.b32.cont [11/16] 0.0, 128
    %762 = vxpose.xlu0.b32.cont [12/16] 0.0, 128
    %763 = vxpose.xlu0.b32.cont [13/16] 0.0, 128
    %764 = vxpose.xlu0.b32.cont [14/16] 0.0, 128
    %765 = vxpose.xlu0.b32.cont [15/16] 0.0, 128
    %766 = vxpose.xlu0.b32.end [16/16] 0.0, 128
    %v767 = vpop.trf.xlu0
    %v768 = vpop.trf.xlu0
    %v769 = vpop.trf.xlu0
    %v770 = vpop.trf.xlu0
    %v771 = vpop.trf.xlu0
    %v772 = vpop.trf.xlu0
    %v773 = vpop.trf.xlu0
    %v774 = vpop.trf.xlu0
    %v775 = vpop.trf.xlu0
    %v776 = vpop.trf.xlu0
    %v777 = vpop.trf.xlu0
    %v778 = vpop.trf.xlu0
    %v779 = vpop.trf.xlu0
    %v780 = vpop.trf.xlu0
    %v781 = vpop.trf.xlu0
    %v782 = vpop.trf.xlu0
    %783 = vxpose.xlu0.b32.start [1/16] %v637, 128
    %784 = vxpose.xlu0.b32.cont [2/16] 0.0, 128
    %785 = vxpose.xlu0.b32.cont [3/16] 0.0, 128
    %786 = vxpose.xlu0.b32.cont [4/16] 0.0, 128
    %787 = vxpose.xlu0.b32.cont [5/16] 0.0, 128
    %788 = vxpose.xlu0.b32.cont [6/16] 0.0, 128
    %789 = vxpose.xlu0.b32.cont [7/16] 0.0, 128
    %790 = vxpose.xlu0.b32.cont [8/16] 0.0, 128
    %791 = vxpose.xlu0.b32.cont [9/16] 0.0, 128
    %792 = vxpose.xlu0.b32.cont [10/16] 0.0, 128
    %793 = vxpose.xlu0.b32.cont [11/16] 0.0, 128
    %794 = vxpose.xlu0.b32.cont [12/16] 0.0, 128
    %795 = vxpose.xlu0.b32.cont [13/16] 0.0, 128
    %796 = vxpose.xlu0.b32.cont [14/16] 0.0, 128
    %797 = vxpose.xlu0.b32.cont [15/16] 0.0, 128
    %798 = vxpose.xlu0.b32.end [16/16] 0.0, 128
    %v799 = vpop.trf.xlu0
    %v800 = vpop.trf.xlu0
    %v801 = vpop.trf.xlu0
    %v802 = vpop.trf.xlu0
    %v803 = vpop.trf.xlu0
    %v804 = vpop.trf.xlu0
    %v805 = vpop.trf.xlu0
    %v806 = vpop.trf.xlu0
    %v807 = vpop.trf.xlu0
    %v808 = vpop.trf.xlu0
    %v809 = vpop.trf.xlu0
    %v810 = vpop.trf.xlu0
    %v811 = vpop.trf.xlu0
    %v812 = vpop.trf.xlu0
    %v813 = vpop.trf.xlu0
    %v814 = vpop.trf.xlu0
    %815 = vxpose.xlu0.b32.start [1/16] %v642, 128
    %816 = vxpose.xlu0.b32.cont [2/16] 0.0, 128
    %817 = vxpose.xlu0.b32.cont [3/16] 0.0, 128
    %818 = vxpose.xlu0.b32.cont [4/16] 0.0, 128
    %819 = vxpose.xlu0.b32.cont [5/16] 0.0, 128
    %820 = vxpose.xlu0.b32.cont [6/16] 0.0, 128
    %821 = vxpose.xlu0.b32.cont [7/16] 0.0, 128
    %822 = vxpose.xlu0.b32.cont [8/16] 0.0, 128
    %823 = vxpose.xlu0.b32.cont [9/16] 0.0, 128
    %824 = vxpose.xlu0.b32.cont [10/16] 0.0, 128
    %825 = vxpose.xlu0.b32.cont [11/16] 0.0, 128
    %826 = vxpose.xlu0.b32.cont [12/16] 0.0, 128
    %827 = vxpose.xlu0.b32.cont [13/16] 0.0, 128
    %828 = vxpose.xlu0.b32.cont [14/16] 0.0, 128
    %829 = vxpose.xlu0.b32.cont [15/16] 0.0, 128
    %830 = vxpose.xlu0.b32.end [16/16] 0.0, 128
    %v831 = vpop.trf.xlu0
    %v832 = vpop.trf.xlu0
    %v833 = vpop.trf.xlu0
    %v834 = vpop.trf.xlu0
    %v835 = vpop.trf.xlu0
    %v836 = vpop.trf.xlu0
    %v837 = vpop.trf.xlu0
    %v838 = vpop.trf.xlu0
    %v839 = vpop.trf.xlu0
    %v840 = vpop.trf.xlu0
    %v841 = vpop.trf.xlu0
    %v842 = vpop.trf.xlu0
    %v843 = vpop.trf.xlu0
    %v844 = vpop.trf.xlu0
    %v845 = vpop.trf.xlu0
    %v846 = vpop.trf.xlu0
    %847 = vxpose.xlu0.b32.start [1/16] %v647, 128
    %848 = vxpose.xlu0.b32.cont [2/16] 0.0, 128
    %849 = vxpose.xlu0.b32.cont [3/16] 0.0, 128
    %850 = vxpose.xlu0.b32.cont [4/16] 0.0, 128
    %851 = vxpose.xlu0.b32.cont [5/16] 0.0, 128
    %852 = vxpose.xlu0.b32.cont [6/16] 0.0, 128
    %853 = vxpose.xlu0.b32.cont [7/16] 0.0, 128
    %854 = vxpose.xlu0.b32.cont [8/16] 0.0, 128
    %855 = vxpose.xlu0.b32.cont [9/16] 0.0, 128
    %856 = vxpose.xlu0.b32.cont [10/16] 0.0, 128
    %857 = vxpose.xlu0.b32.cont [11/16] 0.0, 128
    %858 = vxpose.xlu0.b32.cont [12/16] 0.0, 128
    %859 = vxpose.xlu0.b32.cont [13/16] 0.0, 128
    %860 = vxpose.xlu0.b32.cont [14/16] 0.0, 128
    %861 = vxpose.xlu0.b32.cont [15/16] 0.0, 128
    %862 = vxpose.xlu0.b32.end [16/16] 0.0, 128
    %v863 = vpop.trf.xlu0
    %v864 = vpop.trf.xlu0
    %v865 = vpop.trf.xlu0
    %v866 = vpop.trf.xlu0
    %v867 = vpop.trf.xlu0
    %v868 = vpop.trf.xlu0
    %v869 = vpop.trf.xlu0
    %v870 = vpop.trf.xlu0
    %v871 = vpop.trf.xlu0
    %v872 = vpop.trf.xlu0
    %v873 = vpop.trf.xlu0
    %v874 = vpop.trf.xlu0
    %v875 = vpop.trf.xlu0
    %v876 = vpop.trf.xlu0
    %v877 = vpop.trf.xlu0
    %v878 = vpop.trf.xlu0
    %879 = vxpose.xlu0.b32.start [1/16] %v652, 128
    %880 = vxpose.xlu0.b32.cont [2/16] 0.0, 128
    %881 = vxpose.xlu0.b32.cont [3/16] 0.0, 128
    %882 = vxpose.xlu0.b32.cont [4/16] 0.0, 128
    %883 = vxpose.xlu0.b32.cont [5/16] 0.0, 128
    %884 = vxpose.xlu0.b32.cont [6/16] 0.0, 128
    %885 = vxpose.xlu0.b32.cont [7/16] 0.0, 128
    %886 = vxpose.xlu0.b32.cont [8/16] 0.0, 128
    %887 = vxpose.xlu0.b32.cont [9/16] 0.0, 128
    %888 = vxpose.xlu0.b32.cont [10/16] 0.0, 128
    %889 = vxpose.xlu0.b32.cont [11/16] 0.0, 128
    %890 = vxpose.xlu0.b32.cont [12/16] 0.0, 128
    %891 = vxpose.xlu0.b32.cont [13/16] 0.0, 128
    %892 = vxpose.xlu0.b32.cont [14/16] 0.0, 128
    %893 = vxpose.xlu0.b32.cont [15/16] 0.0, 128
    %894 = vxpose.xlu0.b32.end [16/16] 0.0, 128
    %v895 = vpop.trf.xlu0
    %v896 = vpop.trf.xlu0
    %v897 = vpop.trf.xlu0
    %v898 = vpop.trf.xlu0
    %v899 = vpop.trf.xlu0
    %v900 = vpop.trf.xlu0
    %v901 = vpop.trf.xlu0
    %v902 = vpop.trf.xlu0
    %v903 = vpop.trf.xlu0
    %v904 = vpop.trf.xlu0
    %v905 = vpop.trf.xlu0
    %v906 = vpop.trf.xlu0
    %v907 = vpop.trf.xlu0
    %v908 = vpop.trf.xlu0
    %v909 = vpop.trf.xlu0
    %v910 = vpop.trf.xlu0
    %vm911 = vcmask 64512
    %912 = vst.msk [vmem:[#allocation8] sm:$0xff] %vm911, %v671
    %913 = vst.msk [vmem:[#allocation8 + $0x8] sm:$0xff] %vm911, %v703
    %914 = vst.msk [vmem:[#allocation8 + $0x10] sm:$0xff] %vm911, %v735
    %915 = vst.msk [vmem:[#allocation8 + $0x18] sm:$0xff] %vm911, %v767
    %916 = vst.msk [vmem:[#allocation8 + $0x20] sm:$0xff] %vm911, %v799
    %917 = vst.msk [vmem:[#allocation8 + $0x28] sm:$0xff] %vm911, %v831
    %918 = vst.msk [vmem:[#allocation8 + $0x30] sm:$0xff] %vm911, %v863
    %919 = vst.msk [vmem:[#allocation8 + $0x38] sm:$0xff] %vm911, %v895
    // Predicated region
    $region26: #{resize_bilinear.1} parent=1 // pred_check
      _
    $region27: #{resize_bilinear.1} parent=1 // pred_check_branch
      %921 = sbr.rel (0) target = $region29
    $region28: #{resize_bilinear.1} parent=1 // pred_region
      %s923 = ssub.s32 1024, 1024
      %924 = vsyncadd [#allocation4], %s923
      %s925 = sshll.u32 [#allocation8], 4
      %s926 = int_to_ptr.vmem [resolvable:$true] %s925
      %931 = dma.vmem_to_hbm [thread:$0]  %s926, 1024, %s3, [#allocation4], 128, 128, 8
    $region29: #{resize_bilinear.1} parent=1 // pred_fallthru
      _
    // Predicated region
    $region30: #{resize_bilinear.1} parent=1 // pred_check
      _
    $region31: #{resize_bilinear.1} parent=1 // pred_check_branch
      %933 = sbr.rel (0) target = $region33
    $region32: #{resize_bilinear.1} parent=1 // pred_region
      %934 = dma.done [#allocation4], 1024
    $region33: #{resize_bilinear.1} parent=1 // pred_fallthru
      _
    %935 = vsyncpa [#allocation3], 1
    %936 = vsyncpa [#allocation6], 1
    %937 = vsyncpa [#allocation4], 1

</llo_original>
